<compile_context>
chip_gen: v5e
topology: v5e:2x2
jax: 0.10.0
libtpu: 0.0.40
codegen_flags: <defaults>
</compile_context>

<pallas_src>
import jax
import jax.numpy as jnp
from jax.experimental import pallas as pl
from jax.experimental.pallas import tpu as pltpu


def xor_mlp_kernel(params_ref, x_ref, o_ref):
    # Scalar weights/biases from SMEM (scalar prefetch), read once per tile.
    # params layout: [w1_00, w1_01, w1_10, w1_11, b1_0, b1_1, w2_0, w2_1, b2]
    # with w1 stored (in=2, out=2): w1[i, j] = weight from input i to hidden j.
    w00 = params_ref[0]
    w01 = params_ref[1]
    w10 = params_ref[2]
    w11 = params_ref[3]
    b10 = params_ref[4]
    b11 = params_ref[5]
    v0 = params_ref[6]
    v1 = params_ref[7]
    b2 = params_ref[8]

    x0 = x_ref[0]  # (tm, 128)  batch packed on (sublanes, lanes)
    x1 = x_ref[1]  # (tm, 128)

    # Hidden layer: 2 neurons, unrolled VPU FMAs.
    z0 = x0 * w00 + x1 * w10 + b10
    z1 = x0 * w01 + x1 * w11 + b11
    # sigmoid(z) = 0.5 * (tanh(z/2) + 1): one EUP push per element.
    h0 = 0.5 * (jnp.tanh(0.5 * z0) + 1.0)
    h1 = 0.5 * (jnp.tanh(0.5 * z1) + 1.0)

    # Output neuron (lane-dense, sublane-dense store).
    o_ref[...] = (h0 * v0 + h1 * v1 + b2).astype(o_ref.dtype)


def xor_forward(x, w1, b1, w2, b2, *, max_rows=2048):
    """x: (B, 2) f32; w1: (2, 2) (in, out); b1: (2,); w2: (2, 1); b2: (1,).

    Returns (B, 1) f32, identical to sigmoid(x @ w1 + b1) @ w2 + b2.
    """
    B = x.shape[0]

    # Pack batch onto (rows, 128 lanes); pad only to 128-lane granularity.
    Rp = pl.cdiv(B, 128)
    Bp = Rp * 128

    # Tile rows: multiple of 8 (or full extent for tiny batches).  Aim for at
    # least 2 grid steps when possible so v7x's two TensorCores both run.
    if Rp >= 16:
        tm = min(max_rows, ((pl.cdiv(Rp, 2) + 7) // 8) * 8)
    else:
        tm = Rp
    grid = pl.cdiv(Rp, tm)

    # Lane+sublane dense layout: features leading, batch on (rows, lanes).
    x_t = x.astype(jnp.float32).T  # (2, B)
    if Bp != B:
        x_t = jnp.pad(x_t, ((0, 0), (0, Bp - B)))
    x_p = x_t.reshape(2, Rp, 128)

    # Flatten all 9 scalar parameters for SMEM scalar prefetch.
    params = jnp.concatenate(
        [
            w1.reshape(-1).astype(jnp.float32),  # w00, w01, w10, w11
            b1.reshape(-1).astype(jnp.float32),  # b1_0, b1_1
            w2.reshape(-1).astype(jnp.float32),  # v0, v1
            b2.reshape(-1).astype(jnp.float32),  # b2
        ]
    )

    out = pl.pallas_call(
        xor_mlp_kernel,
        out_shape=jax.ShapeDtypeStruct((Rp, 128), jnp.float32),
        grid_spec=pltpu.PrefetchScalarGridSpec(
            num_scalar_prefetch=1,
            grid=(grid,),
            in_specs=[pl.BlockSpec((2, tm, 128), lambda i, p: (0, i, 0))],
            out_specs=pl.BlockSpec((tm, 128), lambda i, p: (i, 0)),
        ),
        compiler_params=pltpu.CompilerParams(
            dimension_semantics=("parallel",),
            vmem_limit_bytes=32 * 1024 * 1024,
        ),
        cost_estimate=pl.CostEstimate(
            flops=14 * Bp,            # unrolled FMAs per element
            transcendentals=2 * Bp,   # two tanh per element
            bytes_accessed=12 * Bp + 9 * 4,
        ),
    )(params, x_p)

    result = out.reshape(Bp, 1)  # contiguous reshape (free)
    if Bp != B:
        result = result[:B]
    return result


def init_params(key):
    """Deterministic init matching nn.Linear shapes (weights stored transposed)."""
    k1, k2, k3, k4 = jax.random.split(key, 4)
    bound1 = 1.0 / jnp.sqrt(2.0)  # fan_in = 2
    w1 = jax.random.uniform(k1, (2, 2), jnp.float32, -bound1, bound1)  # (in, out)
    b1 = jax.random.uniform(k2, (2,), jnp.float32, -bound1, bound1)
    bound2 = 1.0 / jnp.sqrt(2.0)  # fan_in = 2
    w2 = jax.random.uniform(k3, (2, 1), jnp.float32, -bound2, bound2)  # (in, out)
    b2 = jax.random.uniform(k4, (1,), jnp.float32, -bound2, bound2)
    return w1, b1, w2, b2


def _reference(x, w1, b1, w2, b2):
    return jax.nn.sigmoid(x @ w1 + b1[None, :]) @ w2 + b2[None, :]


if __name__ == "__main__":
    key = jax.random.PRNGKey(0)
    k_param, k_x1, k_x2, k_x3 = jax.random.split(key, 4)

    w1, b1, w2, b2 = init_params(k_param)

    # Small batch consistent with the XOR module (2 input features).
    B = 8
    x = jax.random.uniform(k_x1, (B, 2), jnp.float32)
    out = jax.block_until_ready(xor_forward(x, w1, b1, w2, b2))
    ref = _reference(x, w1, b1, w2, b2)
    assert out.shape == (B, 1)
    assert jnp.allclose(out, ref, atol=1e-5, rtol=1e-5)

    # Batch large enough to exercise the multi-tile ("parallel") grid path.
    B2 = 2048
    x2 = jax.random.uniform(k_x2, (B2, 2), jnp.float32)
    out2 = jax.block_until_ready(xor_forward(x2, w1, b1, w2, b2))
    ref2 = _reference(x2, w1, b1, w2, b2)
    assert out2.shape == (B2, 1)
    assert jnp.allclose(out2, ref2, atol=1e-5, rtol=1e-5)

    # Ragged batch: exercises 128-lane padding and the partial last grid block.
    B3 = 5000
    x3 = jax.random.uniform(k_x3, (B3, 2), jnp.float32)
    out3 = jax.block_until_ready(xor_forward(x3, w1, b1, w2, b2))
    ref3 = _reference(x3, w1, b1, w2, b2)
    assert out3.shape == (B3, 1)
    assert jnp.allclose(out3, ref3, atol=1e-5, rtol=1e-5)

    print("KERNEL_OK")
</pallas_src>

<mosaic_0001>
module attributes {stable_mosaic.version = 11 : i64} {
  func.func @xor_mlp_kernel(%arg0: i32, %arg1: memref<9xf32, #tpu.memory_space<smem>>, %arg2: memref<2x1x128xf32, #tpu.memory_space<vmem>>, %arg3: memref<1x128xf32, #tpu.memory_space<vmem>>) attributes {dimension_semantics = [#tpu.dimension_semantics<parallel>], iteration_bounds = array<i64: 1>, scalar_prefetch = 1 : i64, scratch_operands = 0 : i64, tpu.core_type = #tpu.core_type<tc>, window_params = [{transform_indices = @transform_0, window_bounds = array<i64: 2, 1, 128>}, {transform_indices = @transform_1, window_bounds = array<i64: 1, 128>}]} {
    %c0 = arith.constant 0 : index
    %0 = memref.load %arg1[%c0] : memref<9xf32, #tpu.memory_space<smem>>
    %c1 = arith.constant 1 : index
    %1 = memref.load %arg1[%c1] : memref<9xf32, #tpu.memory_space<smem>>
    %c2 = arith.constant 2 : index
    %2 = memref.load %arg1[%c2] : memref<9xf32, #tpu.memory_space<smem>>
    %c3 = arith.constant 3 : index
    %3 = memref.load %arg1[%c3] : memref<9xf32, #tpu.memory_space<smem>>
    %c4 = arith.constant 4 : index
    %4 = memref.load %arg1[%c4] : memref<9xf32, #tpu.memory_space<smem>>
    %c5 = arith.constant 5 : index
    %5 = memref.load %arg1[%c5] : memref<9xf32, #tpu.memory_space<smem>>
    %c6 = arith.constant 6 : index
    %6 = memref.load %arg1[%c6] : memref<9xf32, #tpu.memory_space<smem>>
    %c7 = arith.constant 7 : index
    %7 = memref.load %arg1[%c7] : memref<9xf32, #tpu.memory_space<smem>>
    %c8 = arith.constant 8 : index
    %8 = memref.load %arg1[%c8] : memref<9xf32, #tpu.memory_space<smem>>
    %c0_0 = arith.constant 0 : index
    %c0_1 = arith.constant 0 : index
    %c0_2 = arith.constant 0 : index
    %9 = vector.load %arg2[%c0_0, %c0_1, %c0_2] : memref<2x1x128xf32, #tpu.memory_space<vmem>>, vector<1x1x128xf32>
    %10 = vector.shape_cast %9 : vector<1x1x128xf32> to vector<1x128xf32>
    %c1_3 = arith.constant 1 : index
    %c0_4 = arith.constant 0 : index
    %c0_5 = arith.constant 0 : index
    %11 = vector.load %arg2[%c1_3, %c0_4, %c0_5] : memref<2x1x128xf32, #tpu.memory_space<vmem>>, vector<1x1x128xf32>
    %12 = vector.shape_cast %11 : vector<1x1x128xf32> to vector<1x128xf32>
    %13 = vector.broadcast %0 : f32 to vector<1x128xf32>
    %14 = arith.mulf %10, %13 : vector<1x128xf32>
    %15 = vector.broadcast %2 : f32 to vector<1x128xf32>
    %16 = arith.mulf %12, %15 : vector<1x128xf32>
    %17 = arith.addf %14, %16 : vector<1x128xf32>
    %18 = vector.broadcast %4 : f32 to vector<1x128xf32>
    %19 = arith.addf %17, %18 : vector<1x128xf32>
    %20 = vector.broadcast %1 : f32 to vector<1x128xf32>
    %21 = arith.mulf %10, %20 : vector<1x128xf32>
    %22 = vector.broadcast %3 : f32 to vector<1x128xf32>
    %23 = arith.mulf %12, %22 : vector<1x128xf32>
    %24 = arith.addf %21, %23 : vector<1x128xf32>
    %25 = vector.broadcast %5 : f32 to vector<1x128xf32>
    %26 = arith.addf %24, %25 : vector<1x128xf32>
    %cst = arith.constant 5.000000e-01 : f32
    %27 = vector.broadcast %cst : f32 to vector<1x128xf32>
    %28 = arith.mulf %27, %19 : vector<1x128xf32>
    %29 = math.tanh %28 : vector<1x128xf32>
    %cst_6 = arith.constant 1.000000e+00 : f32
    %30 = vector.broadcast %cst_6 : f32 to vector<1x128xf32>
    %31 = arith.addf %29, %30 : vector<1x128xf32>
    %cst_7 = arith.constant 5.000000e-01 : f32
    %32 = vector.broadcast %cst_7 : f32 to vector<1x128xf32>
    %33 = arith.mulf %32, %31 : vector<1x128xf32>
    %cst_8 = arith.constant 5.000000e-01 : f32
    %34 = vector.broadcast %cst_8 : f32 to vector<1x128xf32>
    %35 = arith.mulf %34, %26 : vector<1x128xf32>
    %36 = math.tanh %35 : vector<1x128xf32>
    %cst_9 = arith.constant 1.000000e+00 : f32
    %37 = vector.broadcast %cst_9 : f32 to vector<1x128xf32>
    %38 = arith.addf %36, %37 : vector<1x128xf32>
    %cst_10 = arith.constant 5.000000e-01 : f32
    %39 = vector.broadcast %cst_10 : f32 to vector<1x128xf32>
    %40 = arith.mulf %39, %38 : vector<1x128xf32>
    %41 = vector.broadcast %6 : f32 to vector<1x128xf32>
    %42 = arith.mulf %33, %41 : vector<1x128xf32>
    %43 = vector.broadcast %7 : f32 to vector<1x128xf32>
    %44 = arith.mulf %40, %43 : vector<1x128xf32>
    %45 = arith.addf %42, %44 : vector<1x128xf32>
    %46 = vector.broadcast %8 : f32 to vector<1x128xf32>
    %47 = arith.addf %45, %46 : vector<1x128xf32>
    %c0_11 = arith.constant 0 : index
    %c0_12 = arith.constant 0 : index
    %48 = vector.load %arg3[%c0_11, %c0_12] : memref<1x128xf32, #tpu.memory_space<vmem>>, vector<1x128xf32>
    tpu.vector_store %arg3[%c0_11, %c0_12], %47 {strides = array<i32>} : memref<1x128xf32, #tpu.memory_space<vmem>>, vector<1x128xf32>,
    return
  }
  func.func @transform_0(%arg0: i32, %arg1: memref<9xf32, #tpu.memory_space<smem>>) -> (i32, i32, i32) {
    %c0_i32 = arith.constant 0 : i32
    %c0_i32_0 = arith.constant 0 : i32
    %c0_i32_1 = arith.constant 0 : i32
    return %c0_i32, %arg0, %c0_i32_0 : i32, i32, i32
  }
  func.func @transform_1(%arg0: i32, %arg1: memref<9xf32, #tpu.memory_space<smem>>) -> (i32, i32) {
    %c0_i32 = arith.constant 0 : i32
    %c0_i32_0 = arith.constant 0 : i32
    return %arg0, %c0_i32 : i32, i32
  }
}

</mosaic_0001>

<llo_original>
// kernel: tpu_custom_call.1
$region0: #{tpu_custom_call.1}
  #allocation0 [shape = 'u32[]', space=smem, size = 0x4, offset = 0x4, fixed_abs, tag = 'smem constant byte address 0x4 - core index']
  #allocation1 [shape = 'u32[72,128]{1,0:T(1,128)}', space=vmem, size = 0x9000, scoped, tag = 'internal scratch']
  #allocation2 [shape = 's32[1]{0}', space=sflag, size = 0x4, scoped, tag = 'scoped memory for tpu_custom_call.1']
  #allocation3 [shape = 'u8[512]{0}', space=smem, size = 0x200, scoped, tag = 'prefetched SMEM operand 0']
  %s0 = inlined_call_operand.hbm [shape: f32[9], index: 0, kind: input, shape index: {}]
  %s1 = inlined_call_operand.hbm [shape: f32[2,1,128], index: 1, kind: input, shape index: {}]
  %s2 = inlined_call_operand.hbm [shape: f32[1,128], index: 2, kind: output, shape index: {}]
  %s3 = sld [smem:[#allocation0]]
  $region18: #{tpu_custom_call.1} parent=0
    _
  %s5 = ssub.s32 1, %s3
  %s6 = scalar_select 0, %s5, %s3
  %s8 = sshll.u32 %s0, 4
  %s9 = int_to_ptr.hbm [resolvable:$true] %s8
  %11 = dma.hbm_to_smem %s9, 16, [#allocation3], [#allocation2]
  %13 = dma.done [#allocation2], 16
  %14 = sfence
  $region1: #{tpu_custom_call.1} parent=0
    #allocation4 [shape = 'u8[1024]{0}', space=vmem, size = 0x400, scoped, tag = 'input window, operand 1, single buffered']
    #allocation5 [shape = 's32[1]{0}', space=sflag, size = 0x4, scoped, tag = 'scoped memory for tpu_custom_call.1']
    #allocation6 [shape = 's32[1]{0}', space=sflag, size = 0x4, scoped, tag = 'scoped memory for tpu_custom_call.1']
    #allocation7 [shape = 'u8[512]{0}', space=vmem, size = 0x400, scoped, tag = 'output window, operand 0, single buffered']
    %15 = vsyncpa [#allocation5], 0
    %16 = vsyncpa [#allocation6], 0
    // Predicated region
    $region2: #{tpu_custom_call.1} parent=1 // pred_check
      _
    $region3: #{tpu_custom_call.1} parent=1 // pred_check_branch
      %18 = sbr.rel (0) target = $region5
    $region4: #{tpu_custom_call.1} parent=1 // pred_region
      %20 = vsyncadd [#allocation5], 0
      %s21 = sshll.u32 %s1, 4
      %s22 = int_to_ptr.hbm [resolvable:$true] %s21
      %s23 = sshll.u32 [#allocation4], 4
      %s24 = int_to_ptr.vmem [resolvable:$true] %s23
      %29 = dma.hbm_to_vmem [thread:$0]  %s22, 32, %s24, [#allocation5], 16, 16, 1
    $region5: #{tpu_custom_call.1} parent=1 // pred_fallthru
      _
    // Predicated region
    $region6: #{tpu_custom_call.1} parent=1 // pred_check
      _
    $region7: #{tpu_custom_call.1} parent=1 // pred_check_branch
      %31 = sbr.rel (0) target = $region9
    $region8: #{tpu_custom_call.1} parent=1 // pred_region
      %33 = dma.done [#allocation5], 32
    $region9: #{tpu_custom_call.1} parent=1 // pred_fallthru
      _
    %s34 = sld [smem:[#allocation3]]
    %s35 = sld [smem:[#allocation3 + $0x1]]
    %s36 = sld [smem:[#allocation3 + $0x2]]
    %s37 = sld [smem:[#allocation3 + $0x3]]
    %s38 = sld [smem:[#allocation3 + $0x4]]
    %s39 = sld [smem:[#allocation3 + $0x5]]
    %s40 = sld [smem:[#allocation3 + $0x6]]
    %s41 = sld [smem:[#allocation3 + $0x7]]
    %s42 = sld [smem:[#allocation3 + $0x8]]
    %v43 = vld [vmem:[#allocation4] sm:$0x1]
    %s44 = scalar_lea.vmem [#allocation4], 1
    %v45 = vld [vmem:[%s44] sm:$0x1]
    %v46 = vstv %s34
    %v47 = vmul.f32 %v43, %v46
    %v48 = vstv %s36
    %v49 = vmul.f32 %v45, %v48
    %v50 = vadd.f32 %v47, %v49
    %v51 = vstv %s38
    %v52 = vadd.f32 %v50, %v51
    %v53 = vstv %s35
    %v54 = vmul.f32 %v43, %v53
    %v55 = vstv %s37
    %v56 = vmul.f32 %v45, %v55
    %v57 = vadd.f32 %v54, %v56
    %v58 = vstv %s39
    %v59 = vadd.f32 %v57, %v58
    %v60 = vmul.f32 %v52, 0.5
    %v61 = vtanh.pop %v60
    %v62 = vadd.f32 %v61, 1.0
    %v63 = vmul.f32 %v62, 0.5
    %v64 = vmul.f32 %v59, 0.5
    %v65 = vtanh.pop %v64
    %v66 = vadd.f32 %v65, 1.0
    %v67 = vmul.f32 %v66, 0.5
    %v68 = vstv %s40
    %v69 = vmul.f32 %v63, %v68
    %v70 = vstv %s41
    %v71 = vmul.f32 %v67, %v70
    %v72 = vadd.f32 %v69, %v71
    %v73 = vstv %s42
    %v74 = vadd.f32 %v72, %v73
    %75 = vst [vmem:[#allocation7] sm:$0x1] %v74
    // Predicated region
    $region10: #{tpu_custom_call.1} parent=1 // pred_check
      _
    $region11: #{tpu_custom_call.1} parent=1 // pred_check_branch
      %77 = sbr.rel (0) target = $region13
    $region12: #{tpu_custom_call.1} parent=1 // pred_region
      %79 = vsyncadd [#allocation6], 0
      %s81 = sshll.u32 [#allocation7], 4
      %s82 = int_to_ptr.vmem [resolvable:$true] %s81
      %s83 = sshll.u32 %s2, 4
      %s84 = int_to_ptr.hbm [resolvable:$true] %s83
      %86 = dma.vmem_to_hbm [thread:$0]  %s82, 16, %s84, [#allocation6]
    $region13: #{tpu_custom_call.1} parent=1 // pred_fallthru
      _
    // Predicated region
    $region14: #{tpu_custom_call.1} parent=1 // pred_check
      _
    $region15: #{tpu_custom_call.1} parent=1 // pred_check_branch
      %88 = sbr.rel (0) target = $region17
    $region16: #{tpu_custom_call.1} parent=1 // pred_region
      %90 = dma.done [#allocation6], 16
    $region17: #{tpu_custom_call.1} parent=1 // pred_fallthru
      _
    %91 = vsyncpa [#allocation5], 1
    %92 = vsyncpa [#allocation6], 1

</llo_original>
